<compile_context>
chip_gen: v7x
topology: tpu7x:2x2x1
jax: 0.10.0
libtpu: 0.0.40
codegen_flags: <defaults>
</compile_context>

<pallas_src>
import numpy as np
import jax
import jax.numpy as jnp
from jax import lax
from jax.experimental import pallas as pl
from jax.experimental.pallas import tpu as pltpu


def _vmem_capacity_bytes():
    """Physical VMEM of the current chip (fallback: 64 MiB, v7x-conservative)."""
    try:
        info = pltpu.get_tpu_info()
        return int(getattr(info, "vmem_capacity_bytes", 64 << 20))
    except Exception:
        return 64 << 20


def _pick_tile_h(C, CH, CW, itemsize, vmem_cap):
    """Canvas row-tile height.

    Sublane-packing aligned (8 rows f32, 16 bf16, 32 u8/i8), sized so the
    output block is a few MiB (smaller target on 64 MiB-VMEM chips), and small
    enough that the 'parallel' grid has >= ~4 steps when the canvas allows it.
    """
    packing = max(8, 32 // max(1, itemsize))
    if CH <= packing:
        return int(CH)                       # single full-extent tile
    target = (5 << 20) if vmem_cap <= (64 << 20) else (12 << 20)
    rows = (target // max(1, C * CW * itemsize)) // packing * packing
    tile_h = max(packing, min(rows, (CH // packing) * packing))
    if CH >= 4 * packing:                    # keep both v7x TensorCores busy
        cap4 = max(packing, ((CH // 4) // packing) * packing)
        tile_h = min(tile_h, cap4)
    return int(tile_h)


def _make_zoom_out_kernel(*, C, CW, tile_h, left_al, right_al,
                          first_tile, last_tile):
    band_w = right_al - left_al

    def kernel(img_ref, fill_ref, out_ref):
        i = pl.program_id(0)
        fill = fill_ref[...]                              # (C, 1, 1), from VMEM

        # Pure-fill column bands; both start on a 128-lane boundary so the
        # stores are unmasked / lane-dense.
        if left_al > 0:
            out_ref[:, :, 0:left_al] = jnp.broadcast_to(
                fill, (C, tile_h, left_al))
        if right_al < CW:
            out_ref[:, :, right_al:CW] = jnp.broadcast_to(
                fill, (C, tile_h, CW - right_al))

        # Middle (pasted) band [left_al, right_al).  The wrapper pre-padded the
        # image tile with the fill colour on all four sides, so overlapping
        # tiles are a straight lane-aligned copy with no iota / select.
        overlaps = jnp.logical_and(i >= first_tile, i <= last_tile)

        @pl.when(overlaps)
        def _():
            out_ref[:, :, left_al:right_al] = img_ref[...]

        @pl.when(jnp.logical_not(overlaps))
        def _():
            out_ref[:, :, left_al:right_al] = jnp.broadcast_to(
                fill, (C, tile_h, band_w))

    return kernel


def zoom_out_pallas(image, canvas_h, canvas_w, top, left, fill):
    """Paste `image` at (top, left) inside a (canvas_h, canvas_w) fill canvas."""
    C, H, W = image.shape
    dtype = image.dtype
    itemsize = dtype.itemsize
    vmem_cap = _vmem_capacity_bytes()
    tile_h = _pick_tile_h(C, canvas_h, canvas_w, itemsize, vmem_cap)

    # ---- static geometry ---------------------------------------------------
    # Lane-align the pasted column band [left_al, right_al).
    left_al = (left // 128) * 128
    right_al = min(canvas_w, ((left + W + 127) // 128) * 128)
    band_w = right_al - left_al

    # Row-align the image to the canvas row-tiles: pad top by (top % tile_h)
    # rows and the bottom so the padded height is a whole number of tiles.
    first_tile = top // tile_h
    last_tile = (top + H - 1) // tile_h
    n_img_tiles = last_tile - first_tile + 1
    Hp = n_img_tiles * tile_h
    top_pad = top - first_tile * tile_h
    bot_pad = Hp - top_pad - H

    fill_arr = jnp.asarray(fill, dtype=dtype).reshape(C, 1, 1)

    # ---- wrapper-side layout plumbing: pad the image with the fill colour ---
    parts = []
    if left - left_al:
        parts.append(jnp.broadcast_to(fill_arr, (C, H, left - left_al)))
    parts.append(image)
    if right_al - (left + W):
        parts.append(jnp.broadcast_to(fill_arr, (C, H, right_al - (left + W))))
    img = jnp.concatenate(parts, axis=2) if len(parts) > 1 else image

    parts = []
    if top_pad:
        parts.append(jnp.broadcast_to(fill_arr, (C, top_pad, band_w)))
    parts.append(img)
    if bot_pad:
        parts.append(jnp.broadcast_to(fill_arr, (C, bot_pad, band_w)))
    img = jnp.concatenate(parts, axis=1) if len(parts) > 1 else img
    # img: (C, Hp, band_w) — tiles align 1:1 with canvas tiles.

    n_tiles = int(pl.cdiv(canvas_h, tile_h))
    kernel = _make_zoom_out_kernel(C=C, CW=canvas_w, tile_h=tile_h,
                                   left_al=left_al, right_al=right_al,
                                   first_tile=first_tile, last_tile=last_tile)

    # VMEM budget: double-buffered output block + double-buffered input tile.
    out_block = C * tile_h * canvas_w * itemsize
    in_block = C * tile_h * band_w * itemsize
    need = 2 * (out_block + in_block) + (1 << 20)
    vmem_limit = int(min(max(32 << 20, 2 * need), (vmem_cap * 3) // 4))
    vmem_limit = int(max(vmem_limit, need))

    grid_spec = pltpu.PrefetchScalarGridSpec(
        num_scalar_prefetch=0,
        grid=(n_tiles,),
        in_specs=[
            # Grid-tiled image: clamped index map; repeats (no re-DMA) outside
            # the overlapping row range.
            pl.BlockSpec(
                (C, tile_h, band_w),
                lambda i: (0, jnp.clip(i - first_tile, 0, n_img_tiles - 1), 0)),
            # Per-channel fill colour, fetched once (constant index map).
            pl.BlockSpec((C, 1, 1), lambda i: (0, 0, 0)),
        ],
        out_specs=pl.BlockSpec((C, tile_h, canvas_w), lambda i: (0, i, 0)),
    )

    cost = pl.CostEstimate(
        flops=0, transcendentals=0,
        bytes_accessed=itemsize * (C * canvas_h * canvas_w + C * Hp * band_w + C))

    return pl.pallas_call(
        kernel,
        out_shape=jax.ShapeDtypeStruct((C, canvas_h, canvas_w), dtype),
        grid_spec=grid_spec,
        compiler_params=pltpu.CompilerParams(
            dimension_semantics=("parallel",),
            vmem_limit_bytes=vmem_limit),
        cost_estimate=cost,
    )(img, fill_arr)


def _draw_zoom_params(key, orig_h, orig_w, side_range, p):
    """Host-side random draws (mirrors torchvision's Python-scalar behaviour).

    Single device->host sync for all four uniforms.
    """
    u = np.asarray(jax.random.uniform(key, (4,)))
    do_apply = bool(u[0] < p)
    r = side_range[0] + float(u[1]) * (side_range[1] - side_range[0])
    canvas_w = int(orig_w * r)
    canvas_h = int(orig_h * r)
    left = int(float(u[2]) * (canvas_w - orig_w))
    top = int(float(u[3]) * (canvas_h - orig_h))
    return do_apply, canvas_h, canvas_w, top, left


def random_zoom_out(image, key, *, fill=None, side_range=(1.0, 4.0), p=0.5,
                    boxes=None):
    """Mirrors RandomZoomOut.forward(image, target)."""
    if fill is None:
        fill = [0.0, 0.0, 0.0]
    if side_range[0] < 1.0 or side_range[0] > side_range[1]:
        raise ValueError(f"Invalid canvas side range provided {side_range}.")
    if image.ndim == 2:
        image = image[None, :, :]
    if image.ndim != 3:
        raise ValueError(f"image should be 2/3 dimensional. Got {image.ndim}.")
    C, orig_h, orig_w = image.shape

    do_apply, canvas_h, canvas_w, top, left = _draw_zoom_params(
        key, orig_h, orig_w, side_range, p)
    if not do_apply:
        return image, boxes

    fill_vec = [float(fill[c % len(fill)]) for c in range(C)]
    out = zoom_out_pallas(image, canvas_h, canvas_w, top, left, fill_vec)

    if boxes is not None:
        # TODO(synk): tiny (N, 4) box shift kept in plain JAX; a lane-width-4
        # elementwise add is not worth a Pallas kernel.
        boxes = boxes.at[:, 0::2].add(left).at[:, 1::2].add(top)
    return out, boxes


def _reference(image, canvas_h, canvas_w, top, left, fill):
    C = image.shape[0]
    canvas = jnp.broadcast_to(
        jnp.asarray(fill, image.dtype).reshape(C, 1, 1),
        (C, canvas_h, canvas_w))
    return lax.dynamic_update_slice(canvas, image, (0, top, left))


if __name__ == "__main__":
    key = jax.random.PRNGKey(0)
    k_img, k_fwd = jax.random.split(key)

    C, H, W = 3, 16, 16
    fill = [0.1, 0.2, 0.3]
    image = jax.random.normal(k_img, (C, H, W), dtype=jnp.float32)
    boxes = jnp.array([[1.0, 2.0, 8.0, 9.0], [0.0, 0.0, 4.0, 4.0]],
                      dtype=jnp.float32)

    # 1) Full module path: p=1.0 so the zoom-out Pallas kernel always runs.
    out, out_boxes = random_zoom_out(image, k_fwd, fill=fill,
                                     side_range=(1.0, 4.0), p=1.0, boxes=boxes)
    out = jax.block_until_ready(out)

    do_apply, canvas_h, canvas_w, top, left = _draw_zoom_params(
        k_fwd, H, W, (1.0, 4.0), 1.0)
    assert do_apply
    assert out.shape == (C, canvas_h, canvas_w), out.shape
    fill_vec = [float(fill[c % len(fill)]) for c in range(C)]
    ref = _reference(image, canvas_h, canvas_w, top, left, fill_vec)
    assert jnp.allclose(out, ref), "image mismatch vs pure-JAX reference"

    ref_boxes = boxes.at[:, 0::2].add(left).at[:, 1::2].add(top)
    assert jnp.allclose(out_boxes, ref_boxes), "box mismatch vs reference"

    # 2) Direct kernel test with hand-picked geometry that exercises row-tile
    #    boundaries, a partial last tile and an unaligned paste offset.
    ch2, cw2, top2, left2 = 40, 50, 13, 21
    out2 = jax.block_until_ready(
        zoom_out_pallas(image, ch2, cw2, top2, left2, fill_vec))
    ref2 = _reference(image, ch2, cw2, top2, left2, fill_vec)
    assert jnp.allclose(out2, ref2), "direct kernel mismatch vs reference"

    print("KERNEL_OK")
</pallas_src>

<mosaic_0001>
module attributes {stable_mosaic.version = 11 : i64} {
  func.func @kernel(%arg0: i32, %arg1: memref<3x16x17xf32, #tpu.memory_space<vmem>>, %arg2: memref<3x1x1xf32, #tpu.memory_space<vmem>>, %arg3: memref<3x16x17xf32, #tpu.memory_space<vmem>>) attributes {dimension_semantics = [#tpu.dimension_semantics<parallel>], iteration_bounds = array<i64: 2>, scalar_prefetch = 0 : i64, scratch_operands = 0 : i64, tpu.core_type = #tpu.core_type<tc>, window_params = [{transform_indices = @transform_0, window_bounds = array<i64: 3, 16, 17>}, {pipeline_mode = #tpu.pipeline_mode<synchronous>, transform_indices = @transform_1, window_bounds = array<i64: 3, 1, 1>}, {transform_indices = @transform_2, window_bounds = array<i64: 3, 16, 17>}]} {
    %c0 = arith.constant 0 : index
    %c0_0 = arith.constant 0 : index
    %c0_1 = arith.constant 0 : index
    %0 = vector.load %arg2[%c0, %c0_0, %c0_1] : memref<3x1x1xf32, #tpu.memory_space<vmem>>, vector<3x1x1xf32>
    %c0_i32 = arith.constant 0 : i32
    %1 = arith.cmpi sge, %arg0, %c0_i32 : i32
    %c0_i32_2 = arith.constant 0 : i32
    %2 = arith.cmpi sle, %arg0, %c0_i32_2 : i32
    %3 = arith.andi %1, %2 : i1
    %4 = arith.extui %3 : i1 to i32
    %c0_i32_3 = arith.constant 0 : i32
    %5 = arith.cmpi ne, %4, %c0_i32_3 : i32
    scf.if %5 {
      %c0_5 = arith.constant 0 : index
      %c0_6 = arith.constant 0 : index
      %c0_7 = arith.constant 0 : index
      %9 = vector.load %arg1[%c0_5, %c0_6, %c0_7] : memref<3x16x17xf32, #tpu.memory_space<vmem>>, vector<3x16x17xf32>
      %c0_8 = arith.constant 0 : index
      %c0_9 = arith.constant 0 : index
      %c0_10 = arith.constant 0 : index
      %10 = vector.load %arg3[%c0_8, %c0_9, %c0_10] : memref<3x16x17xf32, #tpu.memory_space<vmem>>, vector<3x16x17xf32>
      tpu.vector_store %arg3[%c0_8, %c0_9, %c0_10], %9 {strides = array<i32>} : memref<3x16x17xf32, #tpu.memory_space<vmem>>, vector<3x16x17xf32>,
    } else {
    }
    %true = arith.constant true
    %6 = arith.xori %3, %true : i1
    %7 = arith.extui %6 : i1 to i32
    %c0_i32_4 = arith.constant 0 : i32
    %8 = arith.cmpi ne, %7, %c0_i32_4 : i32
    scf.if %8 {
      %9 = vector.shape_cast %0 : vector<3x1x1xf32> to vector<3x1x1xf32>
      %10 = vector.broadcast %9 : vector<3x1x1xf32> to vector<3x16x17xf32>
      %c0_5 = arith.constant 0 : index
      %c0_6 = arith.constant 0 : index
      %c0_7 = arith.constant 0 : index
      %11 = vector.load %arg3[%c0_5, %c0_6, %c0_7] : memref<3x16x17xf32, #tpu.memory_space<vmem>>, vector<3x16x17xf32>
      tpu.vector_store %arg3[%c0_5, %c0_6, %c0_7], %10 {strides = array<i32>} : memref<3x16x17xf32, #tpu.memory_space<vmem>>, vector<3x16x17xf32>,
    } else {
    }
    return
  }
  func.func @transform_0(%arg0: i32) -> (i32, i32, i32) {
    %c0_i32 = arith.constant 0 : i32
    %0 = arith.subi %arg0, %c0_i32 : i32
    %c0_i32_0 = arith.constant 0 : i32
    %c0_i32_1 = arith.constant 0 : i32
    %1 = arith.maxsi %c0_i32_0, %0 : i32
    %2 = arith.minsi %c0_i32_1, %1 : i32
    %c0_i32_2 = arith.constant 0 : i32
    %c0_i32_3 = arith.constant 0 : i32
    %c0_i32_4 = arith.constant 0 : i32
    return %c0_i32_2, %2, %c0_i32_3 : i32, i32, i32
  }
  func.func @transform_1(%arg0: i32) -> (i32, i32, i32) {
    %c0_i32 = arith.constant 0 : i32
    %c0_i32_0 = arith.constant 0 : i32
    %c0_i32_1 = arith.constant 0 : i32
    %c0_i32_2 = arith.constant 0 : i32
    return %c0_i32, %c0_i32_0, %c0_i32_1 : i32, i32, i32
  }
  func.func @transform_2(%arg0: i32) -> (i32, i32, i32) {
    %c0_i32 = arith.constant 0 : i32
    %c0_i32_0 = arith.constant 0 : i32
    %c0_i32_1 = arith.constant 0 : i32
    return %c0_i32, %arg0, %c0_i32_0 : i32, i32, i32
  }
}

</mosaic_0001>

<llo_original>
// kernel: tpu_custom_call.1
$region0: #{tpu_custom_call.1}
  #allocation0 [shape = 'u32[]', space=smem, size = 0x4, offset = 0x4, fixed_abs, tag = 'smem constant byte address 0x4 - core index']
  #allocation1 [shape = 'u32[144,128]{1,0:T(1,128)}', space=vmem, size = 0x12000, scoped, tag = 'internal scratch']
  %s0 = inlined_call_operand.hbm [shape: f32[3,16,17], index: 0, kind: input, shape index: {}]
  %s1 = inlined_call_operand.vmem [shape: f32[3,1,1], index: 1, kind: input, shape index: {}]
  %s2 = inlined_call_operand.vmem [shape: f32[3,17,17], index: 2, kind: output, shape index: {}]
  %s3 = sld [smem:[#allocation0]]
  $region101: #{tpu_custom_call.1} parent=0
    _
  %s5 = ssub.s32 1, %s3
  %s6 = scalar_select 0, %s5, %s3
  $region1: #{tpu_custom_call.1} parent=0
    #allocation2 [shape = 'u8[49152]{0}', space=vmem, size = 0xc000, scoped, tag = 'input window, operand 0']
    #allocation3 [shape = 's32[2]{0}', space=sflag, size = 0x8, scoped, tag = 'scoped memory for tpu_custom_call.1']
    #allocation4 [shape = 'u8[49152]{0}', space=vmem, size = 0xc000, scoped, tag = 'output window, operand 0']
    %7 = vsyncpa [#allocation3], 0
    %s8 = scalar_lea.sflag [#allocation3], 1
    %9 = vsyncpa %s8, 0
    loop: start=0, step=1, limit=4
    $region2: #{tpu_custom_call.1} parent=1 // loop_pre_header
      _
    $region3: #{tpu_custom_call.1} parent=1 // loop_header
      %s11 = sphi 0, %s15
      %p12 = scmp.ge.s32.totalorder %s11, 4
      %s29 = sphi 0, %s31
      %s32 = sphi 0, %s29
      %s33 = sphi 0, %s32
      %s49 = sphi 0, %s33
      %s53 = sphi 0, %s53
      %s55 = sphi 0, %s53
      %s56 = sphi 0, %s55
      %s70 = sphi 0, %s56
      %s76 = sphi 0, %s78
      %s79 = sphi 0, %s76
      %s80 = sphi 0, %s79
      %s96 = sphi 0, %s80
    $region4: #{tpu_custom_call.1} parent=1 // loop_header_branch
      %14 = sbr.rel (%p12) target = $region8
    $region5: #{tpu_custom_call.1} parent=1 // loop_body
      %s16 = ssub.s32 %s11, 1
      %s17 = ssub.s32 %s11, 2
      %s18 = sadd.s32 %s11, 1
      %p19 = scmp.gt.s32.totalorder %s11, 0
      %s20 = scalar_select %p19, %s11, 0
      %p21 = scmp.lt.s32.totalorder %s20, 0
      %s22 = scalar_select %p21, %s20, 0
      %p23 = scmp.gt.s32.totalorder %s18, 0
      %s24 = scalar_select %p23, %s18, 0
      %p25 = scmp.lt.s32.totalorder %s24, 0
      %s26 = scalar_select %p25, %s24, 0
      %s27 = ssub.s32 %s22, %s26
      %p28 = scmp.eq.s32.totalorder %s27, 0
      %s30 = sadd.s32 %s29, 1
      %s31 = scalar_select %p28, %s29, %s30
      %p34 = pneg %p28
      %p35 = scmp.eq.s32.totalorder %s11, 1
      %p36 = por %p34, %p35
      %p37 = scmp.ne.s32.totalorder %s29, %s32
      %p38 = scmp.eq.s32.totalorder %s11, 0
      %p39 = por %p37, %p38
      %p40 = scmp.ne.s32.totalorder %s29, %s32
      %p41 = scmp.eq.s32.totalorder %s16, 1
      %p42 = por %p40, %p41
      %p43 = scmp.ne.s32.totalorder %s32, %s33
      %p44 = scmp.eq.s32.totalorder %s16, 0
      %p45 = por %p43, %p44
      %p46 = scmp.ne.s32.totalorder %s32, %s33
      %p47 = scmp.eq.s32.totalorder %s17, 1
      %p48 = por %p46, %p47
      %p50 = scmp.ne.s32.totalorder %s33, %s49
      %p51 = scmp.eq.s32.totalorder %s17, 0
      %p52 = por %p50, %p51
      %s54 = sadd.s32 %s53, 1
      %p57 = scmp.eq.s32.totalorder %s11, 1
      %p58 = scmp.ne.s32.totalorder %s53, %s55
      %p59 = scmp.eq.s32.totalorder %s11, 0
      %p60 = por %p58, %p59
      %p61 = scmp.ne.s32.totalorder %s53, %s55
      %p62 = scmp.eq.s32.totalorder %s16, 1
      %p63 = por %p61, %p62
      %p64 = scmp.ne.s32.totalorder %s55, %s56
      %p65 = scmp.eq.s32.totalorder %s16, 0
      %p66 = por %p64, %p65
      %p67 = scmp.ne.s32.totalorder %s55, %s56
      %p68 = scmp.eq.s32.totalorder %s17, 1
      %p69 = por %p67, %p68
      %p71 = scmp.ne.s32.totalorder %s56, %s70
      %p72 = scmp.eq.s32.totalorder %s17, 0
      %p73 = por %p71, %p72
      %s74 = ssub.s32 %s11, %s18
      %p75 = scmp.eq.s32.totalorder %s74, 0
      %s77 = sadd.s32 %s76, 1
      %s78 = scalar_select %p75, %s76, %s77
      %p81 = pneg %p75
      %p82 = scmp.eq.s32.totalorder %s11, 1
      %p83 = por %p81, %p82
      %p84 = scmp.ne.s32.totalorder %s76, %s79
      %p85 = scmp.eq.s32.totalorder %s11, 0
      %p86 = por %p84, %p85
      %p87 = scmp.ne.s32.totalorder %s76, %s79
      %p88 = scmp.eq.s32.totalorder %s16, 1
      %p89 = por %p87, %p88
      %p90 = scmp.ne.s32.totalorder %s79, %s80
      %p91 = scmp.eq.s32.totalorder %s16, 0
      %p92 = por %p90, %p91
      %p93 = scmp.ne.s32.totalorder %s79, %s80
      %p94 = scmp.eq.s32.totalorder %s17, 1
      %p95 = por %p93, %p94
      %p97 = scmp.ne.s32.totalorder %s80, %s96
      %p98 = scmp.eq.s32.totalorder %s17, 0
      %p99 = por %p97, %p98
      %p100 = scmp.le.s32.totalorder 1, %s11
      %p101 = scmp.lt.s32.totalorder %s11, 3
      %p102 = pnand %p100, %p101
      %p103 = pneg %p102
      // Predicated region
      $region9: #{tpu_custom_call.1} parent=5 // pred_check
        _
      $region10: #{tpu_custom_call.1} parent=5 // pred_check_branch
        %105 = sbr.rel (%p102) target = $region12
      $region11: #{tpu_custom_call.1} parent=5 // pred_region
        %s106 = ssub.s32 %s11, 1
        // Predicated region
        $region13: #{tpu_custom_call.1} parent=11 // pred_check
          %p107 = pneg %p66
        $region14: #{tpu_custom_call.1} parent=11 // pred_check_branch
          %109 = sbr.rel (%p107) target = $region16
        $region15: #{tpu_custom_call.1} parent=11 // pred_region
          _
        $region16: #{tpu_custom_call.1} parent=11 // pred_fallthru
          _
      $region12: #{tpu_custom_call.1} parent=5 // pred_fallthru
        _
      %p110 = scmp.lt.s32.totalorder %s11, 2
      // Predicated region
      $region17: #{tpu_custom_call.1} parent=5 // pred_check
        %p111 = pneg %p110
      $region18: #{tpu_custom_call.1} parent=5 // pred_check_branch
        %113 = sbr.rel (%p111) target = $region20
      $region19: #{tpu_custom_call.1} parent=5 // pred_region
        // Predicated region
        $region21: #{tpu_custom_call.1} parent=19 // pred_check
          %p114 = pneg %p39
        $region22: #{tpu_custom_call.1} parent=19 // pred_check_branch
          %116 = sbr.rel (%p114) target = $region24
        $region23: #{tpu_custom_call.1} parent=19 // pred_region
          %s117 = sand.u32 %s29, 1
          %s118 = scalar_lea.sflag [#allocation3], %s117
          %s119 = sand.u32 %s29, 1
          %s120 = smul.addr %s119, 48
          %s121 = scalar_lea.vmem [#allocation2], %s120
          %p122 = scmp.gt.s32.totalorder %s11, 0
          %s123 = scalar_select %p122, %s11, 0
          %p124 = scmp.lt.s32.totalorder %s123, 0
          %s125 = scalar_select %p124, %s123, 0
          %s126 = smul.u32 2, %s125
          %s128 = ssub.s32 768, 768
          %129 = vsyncadd %s118, %s128
          %s130 = smul.addr %s126, 128
          %s131 = scalar_lea.hbm %s0, %s130
          %s132 = sshll.u32 %s121, 4
          %s133 = int_to_ptr.vmem [resolvable:$true] %s132
          %138 = dma.hbm_to_vmem [thread:$0]  %s131, 768, %s133, %s118, 128, 128, 8
        $region24: #{tpu_custom_call.1} parent=19 // pred_fallthru
          _
      $region20: #{tpu_custom_call.1} parent=5 // pred_fallthru
        _
      %p139 = scmp.le.s32.totalorder 1, %s11
      %p140 = scmp.lt.s32.totalorder %s11, 3
      %p141 = pnand %p139, %p140
      %p142 = pneg %p141
      // Predicated region
      $region25: #{tpu_custom_call.1} parent=5 // pred_check
        _
      $region26: #{tpu_custom_call.1} parent=5 // pred_check_branch
        %144 = sbr.rel (%p141) target = $region28
      $region27: #{tpu_custom_call.1} parent=5 // pred_region
        %s145 = ssub.s32 %s11, 1
        %s146 = sand.u32 %s32, 1
        %s147 = scalar_lea.sflag [#allocation3], %s146
        %s148 = sand.u32 %s32, 1
        %s149 = smul.addr %s148, 48
        %s150 = scalar_lea.vmem [#allocation2], %s149
        // Predicated region
        $region29: #{tpu_custom_call.1} parent=27 // pred_check
          %p151 = pneg %p45
        $region30: #{tpu_custom_call.1} parent=27 // pred_check_branch
          %153 = sbr.rel (%p151) target = $region32
        $region31: #{tpu_custom_call.1} parent=27 // pred_region
          %154 = dma.done %s147, 768
        $region32: #{tpu_custom_call.1} parent=27 // pred_fallthru
          _
        %s155 = sand.u32 %s32, 1
        %s156 = scalar_lea.sflag [#allocation3], %s155
        %s157 = sand.u32 %s32, 1
        %s158 = smul.addr %s157, 48
        %s159 = scalar_lea.vmem [#allocation2], %s158
        %p160 = pneg %p45
        %p161 = pneg %p42
        %p162 = pneg %p66
        %p163 = pneg %p63
        %p164 = pneg %p92
        %p165 = pneg %p89
        %s166 = sand.u32 %s79, 1
        %s167 = sand.u32 %s79, 1
        %s168 = smul.addr %s167, 48
        %s169 = scalar_lea.vmem [#allocation4], %s168
        %p170 = scmp.gt.s32.totalorder %s16, 0
        %s171 = scalar_select %p170, %s16, 0
        %p172 = scmp.lt.s32.totalorder %s171, 0
        %s173 = scalar_select %p172, %s171, 0
        %s174 = smul.u32 2, %s173
        %s175 = smul.u32 2, %s16
        %s176 = ssub.s32 3, %s175
        %p177 = scmp.lt.s32.totalorder %s176, 2
        %s178 = scalar_select %p177, %s176, 2
        %s179 = smul.u32 384, %s178
        %v180 = vld [vmem:[%s1] sm:$0x1]
        %v181 = vld [vmem:[%s1 + $0x1] sm:$0x1]
        %v182 = vld [vmem:[%s1 + $0x2] sm:$0x1]
        %p183 = scmp.ge.s32.totalorder %s16, 0
        %p184 = scmp.le.s32.totalorder %s16, 0
        %p185 = pnand %p183, %p184
        %p186 = pneg %p185
        // Predicated region
        $region33: #{tpu_custom_call.1} parent=27 // pred_check
          _
        $region34: #{tpu_custom_call.1} parent=27 // pred_check_branch
          %188 = sbr.rel (%p185) target = $region36
        $region35: #{tpu_custom_call.1} parent=27 // pred_region
          %v189 = vld [vmem:[%s150] sm:$0xff]
          %v190 = vld [vmem:[%s150 + $0x8] sm:$0xff]
          %v191 = vld [vmem:[%s150 + $0x10] sm:$0xff]
          %v192 = vld [vmem:[%s150 + $0x18] sm:$0xff]
          %v193 = vld [vmem:[%s150 + $0x20] sm:$0xff]
          %v194 = vld [vmem:[%s150 + $0x28] sm:$0xff]
          %vm195 = vcmask 138240
          %196 = vst.msk [vmem:[%s169] sm:$0xff] %vm195, %v189
          %197 = vst.msk [vmem:[%s169 + $0x8] sm:$0xff] %vm195, %v190
          %198 = vst.msk [vmem:[%s169 + $0x10] sm:$0xff] %vm195, %v191
          %199 = vst.msk [vmem:[%s169 + $0x18] sm:$0xff] %vm195, %v192
          %200 = vst.msk [vmem:[%s169 + $0x20] sm:$0xff] %vm195, %v193
          %201 = vst.msk [vmem:[%s169 + $0x28] sm:$0xff] %vm195, %v194
        $region36: #{tpu_custom_call.1} parent=27 // pred_fallthru
          _
        %p202 = pneg %p186
        // Predicated region
        $region37: #{tpu_custom_call.1} parent=27 // pred_check
          _
        $region38: #{tpu_custom_call.1} parent=27 // pred_check_branch
          %204 = sbr.rel (%p186) target = $region40
        $region39: #{tpu_custom_call.1} parent=27 // pred_region
          %v208 = vlaneseq
          %v209 = vshrl.u32 %v208, 7
          %v210 = vsub.s32 0, %v209
          %v211 = vrot.slane %v180, %v210
          %v212 = vlaneseq
          %v213 = vshrl.u32 %v212, 7
          %v214 = vsub.s32 0, %v213
          %v215 = vrot.slane %v181, %v214
          %v216 = vlaneseq
          %v217 = vshrl.u32 %v216, 7
          %v218 = vsub.s32 0, %v217
          %v219 = vrot.slane %v182, %v218
          %220 = vset.pattern.permute.xlu0 0
          %221 = vperm.xlu0 %220, %v211
          %v222 = vpop.permute.xlu0 %221
          %224 = vset.pattern.permute.xlu0 0
          %225 = vperm.xlu0 %224, %v215
          %v226 = vpop.permute.xlu0 %225
          %228 = vset.pattern.permute.xlu0 0
          %229 = vperm.xlu0 %228, %v219
          %v230 = vpop.permute.xlu0 %229
          %vm232 = vcmask 138240
          %233 = vst.msk [vmem:[%s169] sm:$0xff] %vm232, %v222
          %234 = vst.msk [vmem:[%s169 + $0x8] sm:$0xff] %vm232, %v222
          %235 = vst.msk [vmem:[%s169 + $0x10] sm:$0xff] %vm232, %v226
          %236 = vst.msk [vmem:[%s169 + $0x18] sm:$0xff] %vm232, %v226
          %237 = vst.msk [vmem:[%s169 + $0x20] sm:$0xff] %vm232, %v230
          %238 = vst.msk [vmem:[%s169 + $0x28] sm:$0xff] %vm232, %v230
        $region40: #{tpu_custom_call.1} parent=27 // pred_fallthru
          _
        %s239 = sand.u32 %s79, 1
        %s240 = sand.u32 %s79, 1
        %s241 = smul.addr %s240, 48
        %s242 = scalar_lea.vmem [#allocation4], %s241
        // Predicated region
        $region41: #{tpu_custom_call.1} parent=27 // pred_check
          %p243 = pneg %p89
        $region42: #{tpu_custom_call.1} parent=27 // pred_check_branch
          %245 = sbr.rel (%p243) target = $region44
        $region43: #{tpu_custom_call.1} parent=27 // pred_region
          %s246 = smul.u32 2, %s16
          %s247 = ssub.s32 3, %s246
          %p248 = scmp.lt.s32.totalorder %s247, 2
          %s249 = scalar_select %p248, %s247, 2
          %s250 = smul.u32 384, %s249
          %p251 = scmp.ne.s32.totalorder 0, %s250
          %s252 = smul.addr %s246, 8
          %s253 = scalar_lea.vmem %s2, %s252
          // Predicated region
          $region45: #{tpu_custom_call.1} parent=43 // pred_check
            %p254 = pneg %p251
          $region46: #{tpu_custom_call.1} parent=43 // pred_check_branch
            %256 = sbr.rel (%p254) target = $region48
          $region47: #{tpu_custom_call.1} parent=43 // pred_region
            // Predicated region
            $region49: #{tpu_custom_call.1} parent=47 // pred_check
              _
            $region50: #{tpu_custom_call.1} parent=47 // pred_check_branch
              %258 = sbr.rel (0) target = $region52
            $region51: #{tpu_custom_call.1} parent=47 // pred_region
              // Predicated region
              $region71: #{tpu_custom_call.1} parent=51 // pred_check
                _
              $region72: #{tpu_custom_call.1} parent=51 // pred_check_branch
                %321 = sbr.rel (0) target = $region74
              $region73: #{tpu_custom_call.1} parent=51 // pred_region
                %s322 = sshrl.u32 %s249, 1
                // While loop
                $region75: #{tpu_custom_call.1} parent=73 // loop_pre_header
                  _
                $region76: #{tpu_custom_call.1} parent=73 // loop_header
                  %s324 = sphi 0, %s326
                  %p325 = scmp.ge.s32.totalorder %s324, %s322
                  %s329 = sphi 0, %s346
                  %s330 = sphi %s242, %s349
                  %s331 = sphi %s253, %s350
                $region77: #{tpu_custom_call.1} parent=73 // loop_header_branch
                  %328 = sbr.rel (%p325) target = $region81
                $region78: #{tpu_custom_call.1} parent=73 // loop_body
                  %v332 = vld [vmem:[%s330] sm:$0xff]
                  %333 = vst [vmem:[%s331] sm:$0xff] %v332
                  %v334 = vld [vmem:[%s330 + $0x8] sm:$0xff]
                  %335 = vst [vmem:[%s331 + $0x8] sm:$0xff] %v334
                  %v336 = vld [vmem:[%s330 + $0x10] sm:$0xff]
                  %337 = vst [vmem:[%s331 + $0x18] sm:$0xff] %v336
                  %v338 = vld [vmem:[%s330 + $0x18] sm:$0xff]
                  %339 = vst [vmem:[%s331 + $0x20] sm:$0xff] %v338
                  %v340 = vld [vmem:[%s330 + $0x20] sm:$0xff]
                  %341 = vst [vmem:[%s331 + $0x30] sm:$0xff] %v340
                  %v342 = vld [vmem:[%s330 + $0x28] sm:$0xff]
                  %343 = vst [vmem:[%s331 + $0x38] sm:$0xff] %v342
                  %s344 = sadd.s32 1, %s329
                  %p345 = scmp.ge.s32.totalorder %s344, %s322
                  %s346 = scalar_select %p345, 0, %s344
                  %s347 = smul.u32 %s346, 16
                  %s348 = smul.u32 %s346, 16
                  %s349 = scalar_lea.vmem %s242, %s347 [#allocation4]
                  %s350 = scalar_lea.vmem %s253, %s348
                $region79: #{tpu_custom_call.1} parent=73 // loop_footer
                  %s326 = sadd.s32 %s324, 1
                $region80: #{tpu_custom_call.1} parent=73 // loop_footer_branch
                  %323 = sbr.rel target = $region76
                $region81: #{tpu_custom_call.1} parent=73 // loop_exit
                  _
                %s351 = sshrl.u32 %s249, 1
                %s352 = sand.u32 %s249, 1
                %s353 = smul.u32 %s351, 2
                %s354 = smul.u32 8, %s353
                %s355 = scalar_lea.vmem %s242, %s354 [#allocation4]
                %s356 = smul.u32 8, %s353
                %s357 = scalar_lea.vmem %s253, %s356
                // While loop
                $region82: #{tpu_custom_call.1} parent=73 // loop_pre_header
                  _
                $region83: #{tpu_custom_call.1} parent=73 // loop_header
                  %s359 = sphi 0, %s361
                  %p360 = scmp.ge.s32.totalorder %s359, %s352
                  %s364 = sphi 0, %s375
                  %s365 = sphi %s355, %s378
                  %s366 = sphi %s357, %s379
                $region84: #{tpu_custom_call.1} parent=73 // loop_header_branch
                  %363 = sbr.rel (%p360) target = $region88
                $region85: #{tpu_custom_call.1} parent=73 // loop_body
                  %v367 = vld [vmem:[%s365] sm:$0xff]
                  %368 = vst [vmem:[%s366] sm:$0xff] %v367
                  %v369 = vld [vmem:[%s365 + $0x10] sm:$0xff]
                  %370 = vst [vmem:[%s366 + $0x18] sm:$0xff] %v369
                  %v371 = vld [vmem:[%s365 + $0x20] sm:$0xff]
                  %372 = vst [vmem:[%s366 + $0x30] sm:$0xff] %v371
                  %s373 = sadd.s32 1, %s364
                  %p374 = scmp.ge.s32.totalorder %s373, %s352
                  %s375 = scalar_select %p374, 0, %s373
                  %s376 = smul.u32 %s375, 8
                  %s377 = smul.u32 %s375, 8
                  %s378 = scalar_lea.vmem %s355, %s376 [#allocation4]
                  %s379 = scalar_lea.vmem %s357, %s377
                $region86: #{tpu_custom_call.1} parent=73 // loop_footer
                  %s361 = sadd.s32 %s359, 1
                $region87: #{tpu_custom_call.1} parent=73 // loop_footer_branch
                  %358 = sbr.rel target = $region83
                $region88: #{tpu_custom_call.1} parent=73 // loop_exit
                  _
              $region74: #{tpu_custom_call.1} parent=51 // pred_fallthru
                _
              // Predicated region
              $region89: #{tpu_custom_call.1} parent=51 // pred_check
                _
              $region90: #{tpu_custom_call.1} parent=51 // pred_check_branch
                %381 = sbr.rel target = $region92
              $region91: #{tpu_custom_call.1} parent=51 // pred_region
                _
              $region92: #{tpu_custom_call.1} parent=51 // pred_fallthru
                _
            $region52: #{tpu_custom_call.1} parent=47 // pred_fallthru
              _
            // Predicated region
            $region53: #{tpu_custom_call.1} parent=47 // pred_check
              _
            $region54: #{tpu_custom_call.1} parent=47 // pred_check_branch
              %260 = sbr.rel target = $region56
            $region55: #{tpu_custom_call.1} parent=47 // pred_region
              %s262 = sshrl.u32 %s249, 1
              // While loop
              $region57: #{tpu_custom_call.1} parent=55 // loop_pre_header
                _
              $region58: #{tpu_custom_call.1} parent=55 // loop_header
                %s264 = sphi 0, %s266
                %p265 = scmp.ge.s32.totalorder %s264, %s262
                %s269 = sphi 0, %s286
                %s270 = sphi %s242, %s289
                %s271 = sphi %s253, %s290
              $region59: #{tpu_custom_call.1} parent=55 // loop_header_branch
                %268 = sbr.rel (%p265) target = $region63
              $region60: #{tpu_custom_call.1} parent=55 // loop_body
                %v272 = vld [vmem:[%s270] sm:$0xff]
                %273 = vst [vmem:[%s271] sm:$0xff] %v272
                %v274 = vld [vmem:[%s270 + $0x8] sm:$0xff]
                %275 = vst [vmem:[%s271 + $0x8] sm:$0xff] %v274
                %v276 = vld [vmem:[%s270 + $0x10] sm:$0xff]
                %277 = vst [vmem:[%s271 + $0x18] sm:$0xff] %v276
                %v278 = vld [vmem:[%s270 + $0x18] sm:$0xff]
                %279 = vst [vmem:[%s271 + $0x20] sm:$0xff] %v278
                %v280 = vld [vmem:[%s270 + $0x20] sm:$0xff]
                %281 = vst [vmem:[%s271 + $0x30] sm:$0xff] %v280
                %v282 = vld [vmem:[%s270 + $0x28] sm:$0xff]
                %283 = vst [vmem:[%s271 + $0x38] sm:$0xff] %v282
                %s284 = sadd.s32 1, %s269
                %p285 = scmp.ge.s32.totalorder %s284, %s262
                %s286 = scalar_select %p285, 0, %s284
                %s287 = smul.u32 %s286, 16
                %s288 = smul.u32 %s286, 16
                %s289 = scalar_lea.vmem %s242, %s287 [#allocation4]
                %s290 = scalar_lea.vmem %s253, %s288
              $region61: #{tpu_custom_call.1} parent=55 // loop_footer
                %s266 = sadd.s32 %s264, 1
              $region62: #{tpu_custom_call.1} parent=55 // loop_footer_branch
                %263 = sbr.rel target = $region58
              $region63: #{tpu_custom_call.1} parent=55 // loop_exit
                _
              %s291 = sshrl.u32 %s249, 1
              %s292 = sand.u32 %s249, 1
              %s293 = smul.u32 %s291, 2
              %s294 = smul.u32 8, %s293
              %s295 = scalar_lea.vmem %s242, %s294 [#allocation4]
              %s296 = smul.u32 8, %s293
              %s297 = scalar_lea.vmem %s253, %s296
              // While loop
              $region64: #{tpu_custom_call.1} parent=55 // loop_pre_header
                _
              $region65: #{tpu_custom_call.1} parent=55 // loop_header
                %s299 = sphi 0, %s301
                %p300 = scmp.ge.s32.totalorder %s299, %s292
                %s304 = sphi 0, %s315
                %s305 = sphi %s295, %s318
                %s306 = sphi %s297, %s319
              $region66: #{tpu_custom_call.1} parent=55 // loop_header_branch
                %303 = sbr.rel (%p300) target = $region70
              $region67: #{tpu_custom_call.1} parent=55 // loop_body
                %v307 = vld [vmem:[%s305] sm:$0xff]
                %308 = vst [vmem:[%s306] sm:$0xff] %v307
                %v309 = vld [vmem:[%s305 + $0x10] sm:$0xff]
                %310 = vst [vmem:[%s306 + $0x18] sm:$0xff] %v309
                %v311 = vld [vmem:[%s305 + $0x20] sm:$0xff]
                %312 = vst [vmem:[%s306 + $0x30] sm:$0xff] %v311
                %s313 = sadd.s32 1, %s304
                %p314 = scmp.ge.s32.totalorder %s313, %s292
                %s315 = scalar_select %p314, 0, %s313
                %s316 = smul.u32 %s315, 8
                %s317 = smul.u32 %s315, 8
                %s318 = scalar_lea.vmem %s295, %s316 [#allocation4]
                %s319 = scalar_lea.vmem %s297, %s317
              $region68: #{tpu_custom_call.1} parent=55 // loop_footer
                %s301 = sadd.s32 %s299, 1
              $region69: #{tpu_custom_call.1} parent=55 // loop_footer_branch
                %298 = sbr.rel target = $region65
              $region70: #{tpu_custom_call.1} parent=55 // loop_exit
                _
            $region56: #{tpu_custom_call.1} parent=47 // pred_fallthru
              _
          $region48: #{tpu_custom_call.1} parent=43 // pred_fallthru
            _
          %382 = vnop
        $region44: #{tpu_custom_call.1} parent=27 // pred_fallthru
          _
      $region28: #{tpu_custom_call.1} parent=5 // pred_fallthru
        _
      %p383 = scmp.le.s32.totalorder 2, %s11
      // Predicated region
      $region93: #{tpu_custom_call.1} parent=5 // pred_check
        %p384 = pneg %p383
      $region94: #{tpu_custom_call.1} parent=5 // pred_check_branch
        %386 = sbr.rel (%p384) target = $region96
      $region95: #{tpu_custom_call.1} parent=5 // pred_region
        %s387 = ssub.s32 %s11, 2
        // Predicated region
        $region97: #{tpu_custom_call.1} parent=95 // pred_check
          %p388 = pneg %p95
        $region98: #{tpu_custom_call.1} parent=95 // pred_check_branch
          %390 = sbr.rel (%p388) target = $region100
        $region99: #{tpu_custom_call.1} parent=95 // pred_region
          %s391 = sand.u32 %s80, 1
          %s392 = sand.u32 %s80, 1
          %s393 = smul.addr %s392, 48
          %s394 = scalar_lea.vmem [#allocation4], %s393
        $region100: #{tpu_custom_call.1} parent=95 // pred_fallthru
          _
      $region96: #{tpu_custom_call.1} parent=5 // pred_fallthru
        _
    $region6: #{tpu_custom_call.1} parent=1 // loop_footer
      %s15 = sadd.s32 1, %s11
    $region7: #{tpu_custom_call.1} parent=1 // loop_footer_branch
      %10 = sbr.rel target = $region3
    $region8: #{tpu_custom_call.1} parent=1 // loop_exit
      _
    %395 = vsyncpa [#allocation3], 1
    %s396 = scalar_lea.sflag [#allocation3], 1
    %397 = vsyncpa %s396, 1

</llo_original>
